<compile_context>
chip_gen: v6e
topology: v6e:2x2x1
jax: 0.10.0
libtpu: 0.0.40
codegen_flags: <defaults>
</compile_context>

<pallas_src>
import functools

import jax
import jax.numpy as jnp
from jax.experimental import pallas as pl
from jax.experimental.pallas import tpu as pltpu

UP_FACTOR = 2   # args.scale[0]
T = 4           # number of unrolled stages


def _round_up(x, m):
    return ((x + m - 1) // m) * m


# --------------------------------------------------------------------------
# Pallas kernels
# --------------------------------------------------------------------------

def _mm_kernel(*refs, mode, relu, c0, c1, n_res):
    """Tiled matmul + bias with optional fused elementwise epilogue.

    modes:
      "none":    out = acc
      "add":     out = acc + r0                       (residual add)
      "lincomb": out = r0 + c0 * (acc - r0)           (z-update)
      "r":       out = r0 - c0 * (acc + c1*(r1 - r0)) (r-update)
    """
    a_ref, b_ref, bias_ref = refs[0], refs[1], refs[2]
    res_refs = refs[3:3 + n_res]
    o_ref = refs[3 + n_res]

    acc = jnp.dot(a_ref[...], b_ref[...], preferred_element_type=jnp.float32)
    acc = acc + bias_ref[...]
    if relu:
        acc = jnp.maximum(acc, 0.0)

    if mode == "add":
        acc = acc + res_refs[0][...]
    elif mode == "lincomb":
        r0 = res_refs[0][...]
        acc = r0 + c0 * (acc - r0)
    elif mode == "r":
        r0 = res_refs[0][...]   # x
        r1 = res_refs[1][...]   # v
        acc = r0 - c0 * (acc + c1 * (r1 - r0))

    o_ref[...] = acc.astype(o_ref.dtype)


def _vmem_limit(tm, K, Npad, n_res):
    # double-buffered bf16 A tile + bf16 weight + f32 bias/out/residual tiles
    need = (2 * tm * K * 2 +
            2 * K * Npad * 2 +
            2 * Npad * 4 +
            2 * tm * Npad * 4 * (1 + n_res))
    return int(min(max(2 * need + 8 * 1024 * 1024, 16 * 1024 * 1024),
                   48 * 1024 * 1024))


def pallas_matmul_bias(a, b, bias, *, relu=False, mode="none",
                       residuals=(), c0=0.0, c1=0.0):
    """(M,K)bf16 @ (K,Npad)bf16 + bias(f32), fused epilogue.  Tiled over M."""
    M, K = a.shape
    _, Npad = b.shape

    # Tile choice: >= 2 grid steps when M >= 16 so the "parallel" axis can be
    # sharded across both v7x TensorCores; tm=128 for the big UNet layers.
    if M >= 256:
        tm = 128
    elif M >= 16:
        tm = _round_up(-(-M // 2), 8)
    else:
        tm = _round_up(max(M, 1), 8)
    Mp = _round_up(M, tm)
    if Mp != M:   # never triggers at the shapes in this model
        a = jnp.pad(a, ((0, Mp - M), (0, 0)))
        residuals = tuple(jnp.pad(r, ((0, Mp - M), (0, 0))) for r in residuals)

    n_res = len(residuals)
    kernel = functools.partial(_mm_kernel, mode=mode, relu=relu,
                               c0=float(c0), c1=float(c1), n_res=n_res)
    in_specs = [
        pl.BlockSpec((tm, K), lambda i: (i, 0)),
        pl.BlockSpec((K, Npad), lambda i: (0, 0)),
        pl.BlockSpec((1, Npad), lambda i: (0, 0)),
    ] + [pl.BlockSpec((tm, Npad), lambda i: (i, 0)) for _ in range(n_res)]

    out = pl.pallas_call(
        kernel,
        out_shape=jax.ShapeDtypeStruct((Mp, Npad), jnp.float32),
        grid=(Mp // tm,),
        in_specs=in_specs,
        out_specs=pl.BlockSpec((tm, Npad), lambda i: (i, 0)),
        compiler_params=pltpu.CompilerParams(
            dimension_semantics=("parallel",),
            vmem_limit_bytes=_vmem_limit(tm, K, Npad, n_res)),
    )(a, b, bias.reshape(1, Npad), *residuals)
    return out[:M]


# ----- standalone elementwise kernels (lane-dense (rows, 128) layout) -------

def _ew_add_kernel(a_ref, b_ref, o_ref):
    o_ref[...] = a_ref[...] + b_ref[...]


def _ew_lincomb_kernel(a_ref, b_ref, o_ref, *, alpha):
    # out = a + alpha * (b - a)
    o_ref[...] = a_ref[...] + alpha * (b_ref[...] - a_ref[...])


def _lane_dense(a):
    n = a.size
    rows = _round_up(-(-n // 128), 8)
    flat = a.reshape(-1)
    if rows * 128 != n:
        flat = jnp.pad(flat, (0, rows * 128 - n))
    return flat.reshape(rows, 128), n


def ew_add(a, b):
    shp = a.shape
    a2, n = _lane_dense(a.astype(jnp.float32))
    b2, _ = _lane_dense(b.astype(jnp.float32))
    out = pl.pallas_call(
        _ew_add_kernel,
        out_shape=jax.ShapeDtypeStruct(a2.shape, jnp.float32),
        in_specs=[pl.BlockSpec(memory_space=pltpu.MemorySpace.VMEM)] * 2,
        out_specs=pl.BlockSpec(memory_space=pltpu.MemorySpace.VMEM),
    )(a2, b2)
    return out.reshape(-1)[:n].reshape(shp)


def ew_lincomb(a, b, alpha):
    shp = a.shape
    a2, n = _lane_dense(a.astype(jnp.float32))
    b2, _ = _lane_dense(b.astype(jnp.float32))
    out = pl.pallas_call(
        functools.partial(_ew_lincomb_kernel, alpha=float(alpha)),
        out_shape=jax.ShapeDtypeStruct(a2.shape, jnp.float32),
        in_specs=[pl.BlockSpec(memory_space=pltpu.MemorySpace.VMEM)] * 2,
        out_specs=pl.BlockSpec(memory_space=pltpu.MemorySpace.VMEM),
    )(a2, b2)
    return out.reshape(-1)[:n].reshape(shp)


# --------------------------------------------------------------------------
# Conv / resize glue (im2col in JAX bf16, matmul+epilogue in Pallas)
# --------------------------------------------------------------------------

def _im2col(x, k, stride, pad):
    N, H, W, C = x.shape
    xp = jnp.pad(x, ((0, 0), (pad, pad), (pad, pad), (0, 0)))
    Ho = (H + 2 * pad - k) // stride + 1
    Wo = (W + 2 * pad - k) // stride + 1
    cols = []
    for di in range(k):
        for dj in range(k):
            cols.append(xp[:, di:di + stride * Ho:stride,
                           dj:dj + stride * Wo:stride, :])
    patches = jnp.concatenate(cols, axis=-1)          # (N, Ho, Wo, k*k*C)
    return patches.reshape(N * Ho * Wo, k * k * C), (N, Ho, Wo)


def conv2d(x, p, k, stride=1, pad=1, relu=False, mode="none",
           residuals=(), c0=0.0, c1=0.0):
    cols, (NB, Ho, Wo) = _im2col(x.astype(jnp.bfloat16), k, stride, pad)
    M = cols.shape[0]
    Npad = p['w'].shape[1]
    res2 = []
    for r in residuals:   # residual spatial matches output spatial (stride-1)
        r2 = r.astype(jnp.float32).reshape(M, -1)
        if r2.shape[1] < Npad:
            r2 = jnp.pad(r2, ((0, 0), (0, Npad - r2.shape[1])))
        res2.append(r2)
    out = pallas_matmul_bias(cols, p['w'], p['b'], relu=relu, mode=mode,
                             residuals=tuple(res2), c0=c0, c1=c1)
    return out[:, :p['cout']].reshape(NB, Ho, Wo, p['cout'])


def resize_hw(x, size):
    # bilinear, half-pixel centers (matches F.interpolate align_corners=False)
    N, _, _, C = x.shape
    return jax.image.resize(x, (N, size[0], size[1], C),
                            method="bilinear", antialias=False)


# --------------------------------------------------------------------------
# Parameters (deterministic, synthetic).  Weights are stored bf16 with the
# output-channel axis padded to a lane-dense width; bias f32, same padding.
# --------------------------------------------------------------------------

def _init_conv(key, k, cin, cout, bias=True):
    kw, kb = jax.random.split(key)
    npad = cout if cout >= 64 else 128          # lane-dense outputs for cout=3/8
    w = jax.random.normal(kw, (k * k * cin, cout), jnp.float32) / jnp.sqrt(k * k * cin)
    w = jnp.pad(w, ((0, 0), (0, npad - cout))).astype(jnp.bfloat16)
    b = (jax.random.normal(kb, (cout,), jnp.float32) * 0.01) if bias \
        else jnp.zeros((cout,), jnp.float32)
    b = jnp.pad(b, (0, npad - cout))
    return {'w': w, 'b': b, 'cout': cout}


def init_params(key):
    keys = iter(jax.random.split(key, 64))
    nk = lambda: next(keys)
    p = {}
    # Fe_e[0]: Conv2d(3,64,3) ; Conv2d(64,64,3)
    p['fe_e0'] = [_init_conv(nk(), 3, 3, 64), _init_conv(nk(), 3, 64, 64)]
    # TODO(synk): EncodingBlock/EncodingBlockEnd/DecodingBlock(End) sources not
    # provided; a simple conv U-Net with stride-2 downs and bilinear ups is assumed.
    p['enc'] = [{'conv': _init_conv(nk(), 3, 64, 64),
                 'down': _init_conv(nk(), 3, 64, 64)} for _ in range(4)]
    p['enc_end'] = _init_conv(nk(), 3, 64, 256)
    p['dec'] = [_init_conv(nk(), 3, 256 + 64, 256) for _ in range(3)]
    p['dec_end'] = _init_conv(nk(), 3, 256 + 64, 64)
    p['construction'] = _init_conv(nk(), 3, 64, 3)
    # TODO(synk): EdgeMap source not provided; approximated as 3x3 conv 3->8.
    p['edgemap'] = _init_conv(nk(), 3, 3, 8)
    # TODO(synk): EAFM source not provided; conv-relu-conv residual block assumed.
    p['eafm'] = [_init_conv(nk(), 3, 8, 8), _init_conv(nk(), 3, 8, 8)]
    # TODO(synk): EGIM / IGRM / UCNet sources not provided; concat+conv stacks assumed.
    p['egim'] = _init_conv(nk(), 3, 3 + 8, 3)
    p['igrm'] = _init_conv(nk(), 3, 3 + 3, 3)
    p['ucnet'] = [_init_conv(nk(), 3, 3, 64), _init_conv(nk(), 3, 64, 3)]
    # TODO(synk): ConvUp/ConvDown sources not provided; bilinear+conv / strided conv assumed.
    p['conv_up'] = _init_conv(nk(), 3, 3, 3)
    p['conv_down'] = _init_conv(nk(), 3, 3, 3)
    p['blur'] = _init_conv(nk(), 3, 3, 3, bias=False)
    p['delta_down'] = _init_conv(nk(), 3, 3, 3)
    p['input_down'] = _init_conv(nk(), 3, 3, 3)
    p['f_down'] = _init_conv(nk(), 3, 8, 8)
    p['y_down'] = _init_conv(nk(), 3, 3, 3)
    # scalar stage coefficients baked into kernels as Python constants
    p['delta_1'] = [0.5] * T
    p['delta_2'] = [0.5] * T
    p['delta_3'] = [0.5] * T
    p['mu'] = [0.1] * T
    return p


# --------------------------------------------------------------------------
# Sub-module forwards
# --------------------------------------------------------------------------

def edgemap(p, x):
    return conv2d(x, p, 3, 1, 1)


def eafm(p, z):
    h = conv2d(z, p[0], 3, 1, 1, relu=True)
    # residual add fused into the second conv's epilogue
    return conv2d(h, p[1], 3, 1, 1, mode="add", residuals=(z,))


def egim(p, t, f):
    return conv2d(jnp.concatenate([t, f], axis=-1), p, 3, 1, 1)


def igrm(p, r, v):
    return conv2d(jnp.concatenate([r, v], axis=-1), p, 3, 1, 1)


def ucnet(p, x):
    h = conv2d(x, p[0], 3, 1, 1, relu=True)
    return conv2d(h, p[1], 3, 1, 1)


def conv_up_fn(p, x, **kw):
    N, H, W, C = x.shape
    return conv2d(resize_hw(x, (H * UP_FACTOR, W * UP_FACTOR)), p, 3, 1, 1, **kw)


def conv_down_fn(p, x):
    return conv2d(x, p, 3, UP_FACTOR, 1)


def unet(p, x):
    fea = conv2d(x, p['fe_e0'][0], 3, 1, 1)
    fea = conv2d(fea, p['fe_e0'][1], 3, 1, 1)
    encodes = []
    h = fea
    for eb in p['enc']:
        e = conv2d(h, eb['conv'], 3, 1, 1, relu=True)
        h = conv2d(e, eb['down'], 3, 2, 1, relu=True)
        encodes.append(e)
    d = conv2d(h, p['enc_end'], 3, 1, 1, relu=True)
    for dp, skip in zip(p['dec'], encodes[::-1][:3]):
        d = resize_hw(d, skip.shape[1:3])
        d = conv2d(jnp.concatenate([d, skip], axis=-1), dp, 3, 1, 1, relu=True)
    skip0 = encodes[0]
    d = resize_hw(d, skip0.shape[1:3])
    # dec_end already applies ReLU == self.act(decode0)
    d = conv2d(jnp.concatenate([d, skip0], axis=-1), p['dec_end'], 3, 1, 1, relu=True)
    return conv2d(d, p['construction'], 3, 1, 1)   # 64 -> 3


# --------------------------------------------------------------------------
# EDDUN forward
# --------------------------------------------------------------------------

def eddun_forward(p, y_nchw):
    y = jnp.transpose(y_nchw, (0, 2, 3, 1)).astype(jnp.float32)   # NHWC
    NB = y.shape[0]
    target_size = y.shape[1:3]
    x = resize_hw(y, (y.shape[1] * UP_FACTOR, y.shape[2] * UP_FACTOR))

    f_init = [edgemap(p['edgemap'], x)]
    x_init = [x]
    v_init = [x]

    decode0 = unet(p, x_init[0])

    out_x = None
    for i in range(T):
        x_sum = ew_add(x_init[i], decode0)                  # x_init[i] + decode0
        input_target = x_sum.shape[1:3]
        y_target = y.shape[1:3]

        # batched input_down on x and v (same weights) -> one bigger matmul call
        xv = jnp.concatenate([x_sum, v_init[i]], axis=0)
        xv_d = conv2d(xv, p['input_down'], 3, 8, 1)
        x_init[i] = xv_d[:NB]
        v_init[i] = xv_d[NB:]
        f_init[i] = conv2d(f_init[i], p['f_down'], 3, 8, 1)
        # y is intentionally overwritten each stage (matches the reference:
        # y_down then resized back to y_target -> cumulative drift).
        y = conv2d(y, p['y_down'], 3, 4, 1)

        # z = f - d1*(f - edgemap(x))  fused into the edgemap conv epilogue
        z = conv2d(x_init[i], p['edgemap'], 3, 1, 1,
                   mode="lincomb", residuals=(f_init[i],), c0=p['delta_1'][i])
        f_init.append(eafm(p['eafm'], z))

        # t = v - d2*(v - x)
        t = ew_lincomb(v_init[i], x_init[i], p['delta_2'][i])
        v_init.append(egim(p['egim'], t, f_init[i + 1]))

        xd = conv_down_fn(p['conv_down'], x_init[i])
        temp_y = resize_hw(y, xd.shape[1:3])
        # r = x - d3*(conv_up(xd - temp_y) + mu*(v - x))  fused into conv_up
        r = conv_up_fn(p['conv_up'], xd - temp_y,
                       mode="r", residuals=(x_init[i], v_init[i + 1]),
                       c0=p['delta_3'][i], c1=p['mu'][i])
        x_init.append(igrm(p['igrm'], r, v_init[i + 1]))

        x_init[i + 1] = resize_hw(x_init[i + 1], input_target)
        v_init[i + 1] = resize_hw(v_init[i + 1], input_target)
        f_init[i + 1] = resize_hw(f_init[i + 1], input_target)
        y = resize_hw(y, y_target)

        blurred_x = conv2d(x_init[i + 1], p['blur'], 3, 1, 1)
        down_out = resize_hw(blurred_x, target_size)
        difference = y - down_out
        delta_uc = resize_hw(difference, (difference.shape[1] * UP_FACTOR,
                                          difference.shape[2] * UP_FACTOR))
        delta_down = conv2d(delta_uc, p['delta_down'], 3, 16, 1)
        delta = ucnet(p['ucnet'], delta_down)
        delta_up = resize_hw(delta, x_init[i + 1].shape[1:3])
        out_x = ew_add(x_init[i + 1], delta_up)

    return jnp.transpose(out_x, (0, 3, 1, 2))   # back to NCHW


if __name__ == "__main__":
    key = jax.random.PRNGKey(0)
    pkey, xkey = jax.random.split(key)
    params = init_params(pkey)
    y = jax.random.normal(xkey, (2, 3, 16, 16), jnp.float32)   # NCHW input
    out = eddun_forward(params, y)
    out = jax.block_until_ready(out)
    assert out.shape == (2, 3, 16 * UP_FACTOR, 16 * UP_FACTOR), out.shape
    assert bool(jnp.all(jnp.isfinite(out)))
    print("KERNEL_OK")
</pallas_src>

<mosaic_0001>
module attributes {stable_mosaic.version = 11 : i64} {
  func.func @_mm_kernel(%arg0: i32, %arg1: memref<128x27xbf16, #tpu.memory_space<vmem>>, %arg2: memref<27x128xbf16, #tpu.memory_space<vmem>>, %arg3: memref<1x128xf32, #tpu.memory_space<vmem>>, %arg4: memref<128x128xf32, #tpu.memory_space<vmem>>) attributes {dimension_semantics = [#tpu.dimension_semantics<parallel>], iteration_bounds = array<i64: 16>, scalar_prefetch = 0 : i64, scratch_operands = 0 : i64, tpu.core_type = #tpu.core_type<tc>, window_params = [{transform_indices = @transform_0, window_bounds = array<i64: 128, 27>}, {pipeline_mode = #tpu.pipeline_mode<synchronous>, transform_indices = @transform_1, window_bounds = array<i64: 27, 128>}, {pipeline_mode = #tpu.pipeline_mode<synchronous>, transform_indices = @transform_2, window_bounds = array<i64: 1, 128>}, {transform_indices = @transform_3, window_bounds = array<i64: 128, 128>}]} {
    %c0 = arith.constant 0 : index
    %c0_0 = arith.constant 0 : index
    %0 = vector.load %arg1[%c0, %c0_0] : memref<128x27xbf16, #tpu.memory_space<vmem>>, vector<128x27xbf16>
    %c0_1 = arith.constant 0 : index
    %c0_2 = arith.constant 0 : index
    %1 = vector.load %arg2[%c0_1, %c0_2] : memref<27x128xbf16, #tpu.memory_space<vmem>>, vector<27x128xbf16>
    %cst = arith.constant dense<0.000000e+00> : vector<128x128xf32>
    %2 = tpu.matmul %0, %1, %cst {dimension_numbers = #tpu.dot_dimension_numbers<[1], [0], [0], [1], [0, 0, 1, 1], [], []>} : vector<128x27xbf16>, vector<27x128xbf16>, vector<128x128xf32> -> vector<128x128xf32>
    %c0_3 = arith.constant 0 : index
    %c0_4 = arith.constant 0 : index
    %3 = vector.load %arg3[%c0_3, %c0_4] : memref<1x128xf32, #tpu.memory_space<vmem>>, vector<1x128xf32>
    %4 = vector.broadcast %3 : vector<1x128xf32> to vector<128x128xf32>
    %5 = arith.addf %2, %4 : vector<128x128xf32>
    %c0_5 = arith.constant 0 : index
    %c0_6 = arith.constant 0 : index
    %6 = vector.load %arg4[%c0_5, %c0_6] : memref<128x128xf32, #tpu.memory_space<vmem>>, vector<128x128xf32>
    tpu.vector_store %arg4[%c0_5, %c0_6], %5 {strides = array<i32>} : memref<128x128xf32, #tpu.memory_space<vmem>>, vector<128x128xf32>,
    return
  }
  func.func @transform_0(%arg0: i32) -> (i32, i32) {
    %c0_i32 = arith.constant 0 : i32
    %c0_i32_0 = arith.constant 0 : i32
    return %arg0, %c0_i32 : i32, i32
  }
  func.func @transform_1(%arg0: i32) -> (i32, i32) {
    %c0_i32 = arith.constant 0 : i32
    %c0_i32_0 = arith.constant 0 : i32
    %c0_i32_1 = arith.constant 0 : i32
    return %c0_i32, %c0_i32_0 : i32, i32
  }
  func.func @transform_2(%arg0: i32) -> (i32, i32) {
    %c0_i32 = arith.constant 0 : i32
    %c0_i32_0 = arith.constant 0 : i32
    %c0_i32_1 = arith.constant 0 : i32
    return %c0_i32, %c0_i32_0 : i32, i32
  }
  func.func @transform_3(%arg0: i32) -> (i32, i32) {
    %c0_i32 = arith.constant 0 : i32
    %c0_i32_0 = arith.constant 0 : i32
    return %arg0, %c0_i32 : i32, i32
  }
}

</mosaic_0001>

<llo_original>
// kernel: tpu_custom_call.1
$region0: #{tpu_custom_call.1}
  #allocation0 [shape = 'u32[]', space=smem, size = 0x4, offset = 0x4, fixed_abs, tag = 'smem constant byte address 0x4 - core index']
  #allocation1 [shape = 'u32[144,128]{1,0:T(1,128)}', space=vmem, size = 0x12000, scoped, tag = 'internal scratch']
  %s0 = inlined_call_operand.vmem [shape: bf16[2048,27], index: 0, kind: input, shape index: {}]
  %s1 = inlined_call_operand.vmem [shape: bf16[27,128], index: 1, kind: input, shape index: {}]
  %s2 = inlined_call_operand.vmem [shape: f32[1,128], index: 2, kind: input, shape index: {}]
  %s3 = inlined_call_operand.hbm [shape: f32[2048,128], index: 3, kind: output, shape index: {}]
  %s4 = sld [smem:[#allocation0]]
  $region45: #{tpu_custom_call.1} parent=0
    _
  %s6 = ssub.s32 1, %s4
  %s7 = scalar_select 0, %s6, %s4
  $region1: #{tpu_custom_call.1} parent=0
    #allocation2 [shape = 'u8[131072]{0}', space=vmem, size = 0x20000, scoped, tag = 'output window, operand 0']
    #allocation3 [shape = 's32[2]{0}', space=sflag, size = 0x8, scoped, tag = 'scoped memory for tpu_custom_call.1']
    %8 = vsyncpa [#allocation3], 0
    %s9 = scalar_lea.sflag [#allocation3], 1
    %10 = vsyncpa %s9, 0
    loop: start=0, step=1, limit=18
    $region2: #{tpu_custom_call.1} parent=1 // loop_pre_header
      _
    $region3: #{tpu_custom_call.1} parent=1 // loop_header
      %s12 = sphi 0, %s16
      %p13 = scmp.ge.s32.totalorder %s12, 18
      %s22 = sphi 0, %s24
      %s25 = sphi 0, %s22
      %s26 = sphi 0, %s25
      %s42 = sphi 0, %s26
      %s46 = sphi 0, %s46
      %s48 = sphi 0, %s46
      %s49 = sphi 0, %s48
      %s63 = sphi 0, %s49
      %s67 = sphi 0, %s67
      %s69 = sphi 0, %s67
      %s70 = sphi 0, %s69
      %s84 = sphi 0, %s70
      %s90 = sphi 0, %s92
      %s93 = sphi 0, %s90
      %s94 = sphi 0, %s93
      %s110 = sphi 0, %s94
    $region4: #{tpu_custom_call.1} parent=1 // loop_header_branch
      %15 = sbr.rel (%p13) target = $region8
    $region5: #{tpu_custom_call.1} parent=1 // loop_body
      %s17 = ssub.s32 %s12, 1
      %s18 = ssub.s32 %s12, 2
      %s19 = sadd.s32 %s12, 1
      %s20 = ssub.s32 %s12, %s19
      %p21 = scmp.eq.s32.totalorder %s20, 0
      %s23 = sadd.s32 %s22, 1
      %s24 = scalar_select %p21, %s22, %s23
      %p27 = pneg %p21
      %p28 = scmp.eq.s32.totalorder %s12, 15
      %p29 = por %p27, %p28
      %p30 = scmp.ne.s32.totalorder %s22, %s25
      %p31 = scmp.eq.s32.totalorder %s12, 0
      %p32 = por %p30, %p31
      %p33 = scmp.ne.s32.totalorder %s22, %s25
      %p34 = scmp.eq.s32.totalorder %s17, 15
      %p35 = por %p33, %p34
      %p36 = scmp.ne.s32.totalorder %s25, %s26
      %p37 = scmp.eq.s32.totalorder %s17, 0
      %p38 = por %p36, %p37
      %p39 = scmp.ne.s32.totalorder %s25, %s26
      %p40 = scmp.eq.s32.totalorder %s18, 15
      %p41 = por %p39, %p40
      %p43 = scmp.ne.s32.totalorder %s26, %s42
      %p44 = scmp.eq.s32.totalorder %s18, 0
      %p45 = por %p43, %p44
      %s47 = sadd.s32 %s46, 1
      %p50 = scmp.eq.s32.totalorder %s12, 15
      %p51 = scmp.ne.s32.totalorder %s46, %s48
      %p52 = scmp.eq.s32.totalorder %s12, 0
      %p53 = por %p51, %p52
      %p54 = scmp.ne.s32.totalorder %s46, %s48
      %p55 = scmp.eq.s32.totalorder %s17, 15
      %p56 = por %p54, %p55
      %p57 = scmp.ne.s32.totalorder %s48, %s49
      %p58 = scmp.eq.s32.totalorder %s17, 0
      %p59 = por %p57, %p58
      %p60 = scmp.ne.s32.totalorder %s48, %s49
      %p61 = scmp.eq.s32.totalorder %s18, 15
      %p62 = por %p60, %p61
      %p64 = scmp.ne.s32.totalorder %s49, %s63
      %p65 = scmp.eq.s32.totalorder %s18, 0
      %p66 = por %p64, %p65
      %s68 = sadd.s32 %s67, 1
      %p71 = scmp.eq.s32.totalorder %s12, 15
      %p72 = scmp.ne.s32.totalorder %s67, %s69
      %p73 = scmp.eq.s32.totalorder %s12, 0
      %p74 = por %p72, %p73
      %p75 = scmp.ne.s32.totalorder %s67, %s69
      %p76 = scmp.eq.s32.totalorder %s17, 15
      %p77 = por %p75, %p76
      %p78 = scmp.ne.s32.totalorder %s69, %s70
      %p79 = scmp.eq.s32.totalorder %s17, 0
      %p80 = por %p78, %p79
      %p81 = scmp.ne.s32.totalorder %s69, %s70
      %p82 = scmp.eq.s32.totalorder %s18, 15
      %p83 = por %p81, %p82
      %p85 = scmp.ne.s32.totalorder %s70, %s84
      %p86 = scmp.eq.s32.totalorder %s18, 0
      %p87 = por %p85, %p86
      %s88 = ssub.s32 %s12, %s19
      %p89 = scmp.eq.s32.totalorder %s88, 0
      %s91 = sadd.s32 %s90, 1
      %s92 = scalar_select %p89, %s90, %s91
      %p95 = pneg %p89
      %p96 = scmp.eq.s32.totalorder %s12, 15
      %p97 = por %p95, %p96
      %p98 = scmp.ne.s32.totalorder %s90, %s93
      %p99 = scmp.eq.s32.totalorder %s12, 0
      %p100 = por %p98, %p99
      %p101 = scmp.ne.s32.totalorder %s90, %s93
      %p102 = scmp.eq.s32.totalorder %s17, 15
      %p103 = por %p101, %p102
      %p104 = scmp.ne.s32.totalorder %s93, %s94
      %p105 = scmp.eq.s32.totalorder %s17, 0
      %p106 = por %p104, %p105
      %p107 = scmp.ne.s32.totalorder %s93, %s94
      %p108 = scmp.eq.s32.totalorder %s18, 15
      %p109 = por %p107, %p108
      %p111 = scmp.ne.s32.totalorder %s94, %s110
      %p112 = scmp.eq.s32.totalorder %s18, 0
      %p113 = por %p111, %p112
      %p114 = scmp.le.s32.totalorder 1, %s12
      %p115 = scmp.lt.s32.totalorder %s12, 17
      %p116 = pnand %p114, %p115
      %p117 = pneg %p116
      // Predicated region
      $region9: #{tpu_custom_call.1} parent=5 // pred_check
        _
      $region10: #{tpu_custom_call.1} parent=5 // pred_check_branch
        %119 = sbr.rel (%p116) target = $region12
      $region11: #{tpu_custom_call.1} parent=5 // pred_region
        %s120 = ssub.s32 %s12, 1
        // Predicated region
        $region13: #{tpu_custom_call.1} parent=11 // pred_check
          %p121 = pneg %p59
        $region14: #{tpu_custom_call.1} parent=11 // pred_check_branch
          %123 = sbr.rel (%p121) target = $region16
        $region15: #{tpu_custom_call.1} parent=11 // pred_region
          _
        $region16: #{tpu_custom_call.1} parent=11 // pred_fallthru
          _
        // Predicated region
        $region17: #{tpu_custom_call.1} parent=11 // pred_check
          %p124 = pneg %p80
        $region18: #{tpu_custom_call.1} parent=11 // pred_check_branch
          %126 = sbr.rel (%p124) target = $region20
        $region19: #{tpu_custom_call.1} parent=11 // pred_region
          _
        $region20: #{tpu_custom_call.1} parent=11 // pred_fallthru
          _
      $region12: #{tpu_custom_call.1} parent=5 // pred_fallthru
        _
      %p127 = scmp.lt.s32.totalorder %s12, 16
      // Predicated region
      $region21: #{tpu_custom_call.1} parent=5 // pred_check
        %p128 = pneg %p127
      $region22: #{tpu_custom_call.1} parent=5 // pred_check_branch
        %130 = sbr.rel (%p128) target = $region24
      $region23: #{tpu_custom_call.1} parent=5 // pred_region
        // Predicated region
        $region25: #{tpu_custom_call.1} parent=23 // pred_check
          %p131 = pneg %p32
        $region26: #{tpu_custom_call.1} parent=23 // pred_check_branch
          %133 = sbr.rel (%p131) target = $region28
        $region27: #{tpu_custom_call.1} parent=23 // pred_region
          %s134 = smul.u32 16, %s12
          %p135 = scmp.lt.s32.totalorder %s134, 255
          %s136 = scalar_select %p135, %s134, 255
          %s137 = smul.addr %s136, 4
          %s138 = scalar_lea.vmem %s0, %s137
          %s139 = smul.u32 16, %s12
        $region28: #{tpu_custom_call.1} parent=23 // pred_fallthru
          _
      $region24: #{tpu_custom_call.1} parent=5 // pred_fallthru
        _
      %p140 = scmp.le.s32.totalorder 1, %s12
      %p141 = scmp.lt.s32.totalorder %s12, 17
      %p142 = pnand %p140, %p141
      %p143 = pneg %p142
      // Predicated region
      $region29: #{tpu_custom_call.1} parent=5 // pred_check
        _
      $region30: #{tpu_custom_call.1} parent=5 // pred_check_branch
        %145 = sbr.rel (%p142) target = $region32
      $region31: #{tpu_custom_call.1} parent=5 // pred_region
        %s146 = ssub.s32 %s12, 1
        %s147 = smul.u32 16, %s17
        %p148 = scmp.lt.s32.totalorder %s147, 255
        %s149 = scalar_select %p148, %s147, 255
        %s150 = smul.addr %s149, 4
        %s151 = scalar_lea.vmem %s0, %s150
        %p152 = pneg %p38
        %p153 = pneg %p35
        %p154 = pneg %p59
        %p155 = pneg %p56
        %p156 = pneg %p80
        %p157 = pneg %p77
        %p158 = pneg %p106
        %p159 = pneg %p103
        %s160 = sand.u32 %s93, 1
        %s161 = scalar_lea.sflag [#allocation3], %s160
        %s162 = sand.u32 %s93, 1
        %s163 = smul.addr %s162, 128
        %s164 = scalar_lea.vmem [#allocation2], %s163
        %s165 = smul.u32 16, %s17
        %p166 = scmp.lt.s32.totalorder %s165, 255
        %s167 = scalar_select %p166, %s165, 255
        %s168 = smul.addr %s167, 4
        %s169 = scalar_lea.vmem %s0, %s168
        %s170 = smul.u32 16, %s17
        %s171 = smul.u32 16, %s17
        %v173 = vld [vmem:[%s169] sm:$0xf]
        %v174 = vld [vmem:[%s169 + $0x4] sm:$0xf]
        %v175 = vld [vmem:[%s169 + $0x8] sm:$0xf]
        %v176 = vld [vmem:[%s169 + $0xc] sm:$0xf]
        %v177 = vld [vmem:[%s169 + $0x10] sm:$0xf]
        %v178 = vld [vmem:[%s169 + $0x14] sm:$0xf]
        %v179 = vld [vmem:[%s169 + $0x18] sm:$0xf]
        %v180 = vld [vmem:[%s169 + $0x1c] sm:$0xf]
        %v181 = vld [vmem:[%s169 + $0x20] sm:$0xf]
        %v182 = vld [vmem:[%s169 + $0x24] sm:$0xf]
        %v183 = vld [vmem:[%s169 + $0x28] sm:$0xf]
        %v184 = vld [vmem:[%s169 + $0x2c] sm:$0xf]
        %v185 = vld [vmem:[%s169 + $0x30] sm:$0xf]
        %v186 = vld [vmem:[%s169 + $0x34] sm:$0xf]
        %v187 = vld [vmem:[%s169 + $0x38] sm:$0xf]
        %v188 = vld [vmem:[%s169 + $0x3c] sm:$0xf]
        %v189 = vld [vmem:[%s1] sm:$0xf]
        %v190 = vld [vmem:[%s1 + $0x4] sm:$0xf]
        %v191 = vld [vmem:[%s1 + $0x8] sm:$0xf]
        %v192 = vld [vmem:[%s1 + $0xc] sm:$0x3]
        %v193 = vld [vmem:[%s2] sm:$0x1]
        %v195 = vlaneseq
        %v196 = vshrl.u32 %v195, 7
        %v197 = vsub.s32 0, %v196
        %v198 = vrot.slane %v193, %v197
        %v216 = vunpack.c.l.b16 %v173
        %v217 = vunpack.c.l.b16 %v174
        %v218 = vunpack.c.l.b16 %v175
        %v219 = vunpack.c.l.b16 %v176
        %v220 = vunpack.c.l.b16 %v177
        %v221 = vunpack.c.l.b16 %v178
        %v222 = vunpack.c.l.b16 %v179
        %v223 = vunpack.c.l.b16 %v180
        %v224 = vunpack.c.l.b16 %v181
        %v225 = vunpack.c.l.b16 %v182
        %v226 = vunpack.c.l.b16 %v183
        %v227 = vunpack.c.l.b16 %v184
        %v228 = vunpack.c.l.b16 %v185
        %v229 = vunpack.c.l.b16 %v186
        %v230 = vunpack.c.l.b16 %v187
        %v231 = vunpack.c.l.b16 %v188
        %v232 = vpack.c.b16 %v217, %v216
        %v233 = vpack.c.b16 %v219, %v218
        %v234 = vpack.c.b16 %v221, %v220
        %v235 = vpack.c.b16 %v223, %v222
        %v236 = vpack.c.b16 %v225, %v224
        %v237 = vpack.c.b16 %v227, %v226
        %v238 = vpack.c.b16 %v229, %v228
        %v239 = vpack.c.b16 %v231, %v230
        %v244 = vunpack.c.l.b16 %v189
        %v245 = vunpack.c.l.b16 %v190
        %v246 = vunpack.c.l.b16 %v191
        %v247 = vunpack.c.l.b16 %v192
        %v248 = vpack.c.b16 %v245, %v244
        %v249 = vpack.c.b16 %v247, %v246
        %vm251 = vcmask 220160
        %v253 = vsel %vm251, %v232, 0
        %v256 = vsel %vm251, %v233, 0
        %v259 = vsel %vm251, %v234, 0
        %v262 = vsel %vm251, %v235, 0
        %v265 = vsel %vm251, %v236, 0
        %v268 = vsel %vm251, %v237, 0
        %v271 = vsel %vm251, %v238, 0
        %v274 = vsel %vm251, %v239, 0
        %vm276 = vcmask 1044480
        %vm277 = vcmask 1045504
        %v278 = vsel %vm276, 4294967295, 65535
        %v279 = vsel %vm277, %v278, 0
        %v281 = vand.u32 %v249, %v279
        %283 = vmatprep.subr.bf16.mxu0 0
        %284 = vmatpush1.bf16.msra.mxu0 0
        %285 = vmatprep.subr.bf16.mxu0 0
        %286 = vmatpush1.bf16.msra.mxu0 0
        %287 = vmatprep.subr.bf16.mxu0 0
        %288 = vmatpush1.bf16.msra.mxu0 0
        %289 = vmatprep.subr.bf16.mxu0 0
        %290 = vmatpush1.bf16.msra.mxu0 0
        %291 = vmatprep.subr.bf16.mxu0 0
        %292 = vmatpush1.bf16.msra.mxu0 0
        %293 = vmatprep.subr.bf16.mxu0 0
        %294 = vmatpush1.bf16.msra.mxu0 0
        %295 = vmatprep.subr.bf16.mxu0 0
        %296 = vmatpush1.bf16.msra.mxu0 %v281
        %297 = vmatprep.subr.bf16.mxu0 0
        %298 = vmatpush1.bf16.msra.mxu0 %v248
        %299 = vmatprep.subr.bf16.mxu0 0
        %300 = vmatpush2.bf16.msra.mxu0 0
        %301 = vmatprep.subr.bf16.mxu0 0
        %302 = vmatpush2.bf16.msra.mxu0 0
        %303 = vmatprep.subr.bf16.mxu0 0
        %304 = vmatpush2.bf16.msra.mxu0 0
        %305 = vmatprep.subr.bf16.mxu0 0
        %306 = vmatpush2.bf16.msra.mxu0 0
        %307 = vmatprep.subr.bf16.mxu0 0
        %308 = vmatpush2.bf16.msra.mxu0 0
        %309 = vmatprep.subr.bf16.mxu0 0
        %310 = vmatpush2.bf16.msra.mxu0 0
        %311 = vmatprep.subr.bf16.mxu0 0
        %312 = vmatpush2.bf16.msra.mxu0 0
        %313 = vmatprep.subr.bf16.mxu0 0
        %314 = vmatpush2.bf16.msra.mxu0 0
        %315 = vmatprep.mubr.bf16.mxu0 0
        %316 = vmatmul.mubr.bf16.gmra.mxu0 %v253
        %v317 = vpop.f32.mrf.mxu0
        %v318 = vadd.f32 %v198, %v317
        %v319 = vpop.f32.mrf.mxu0
        %v320 = vpop.f32.mrf.mxu0
        %v321 = vadd.f32 %v198, %v320
        %v322 = vpop.f32.mrf.mxu0
        %323 = vmatprep.mubr.bf16.mxu0 0
        %324 = vmatmul.mubr.bf16.gmra.mxu0 %v256
        %v325 = vpop.f32.mrf.mxu0
        %v326 = vadd.f32 %v198, %v325
        %v327 = vpop.f32.mrf.mxu0
        %v328 = vpop.f32.mrf.mxu0
        %v329 = vadd.f32 %v198, %v328
        %v330 = vpop.f32.mrf.mxu0
        %331 = vmatprep.mubr.bf16.mxu0 0
        %332 = vmatmul.mubr.bf16.gmra.mxu0 %v259
        %v333 = vpop.f32.mrf.mxu0
        %v334 = vadd.f32 %v198, %v333
        %v335 = vpop.f32.mrf.mxu0
        %v336 = vpop.f32.mrf.mxu0
        %v337 = vadd.f32 %v198, %v336
        %v338 = vpop.f32.mrf.mxu0
        %339 = vmatprep.mubr.bf16.mxu0 0
        %340 = vmatmul.mubr.bf16.gmra.mxu0 %v262
        %v341 = vpop.f32.mrf.mxu0
        %v342 = vadd.f32 %v198, %v341
        %v343 = vpop.f32.mrf.mxu0
        %v344 = vpop.f32.mrf.mxu0
        %v345 = vadd.f32 %v198, %v344
        %v346 = vpop.f32.mrf.mxu0
        %347 = vmatprep.mubr.bf16.mxu0 0
        %348 = vmatmul.mubr.bf16.gmra.mxu0 %v265
        %v349 = vpop.f32.mrf.mxu0
        %v350 = vadd.f32 %v198, %v349
        %v351 = vpop.f32.mrf.mxu0
        %v352 = vpop.f32.mrf.mxu0
        %v353 = vadd.f32 %v198, %v352
        %v354 = vpop.f32.mrf.mxu0
        %355 = vmatprep.mubr.bf16.mxu0 0
        %356 = vmatmul.mubr.bf16.gmra.mxu0 %v268
        %v357 = vpop.f32.mrf.mxu0
        %v358 = vadd.f32 %v198, %v357
        %v359 = vpop.f32.mrf.mxu0
        %v360 = vpop.f32.mrf.mxu0
        %v361 = vadd.f32 %v198, %v360
        %v362 = vpop.f32.mrf.mxu0
        %363 = vmatprep.mubr.bf16.mxu0 0
        %364 = vmatmul.mubr.bf16.gmra.mxu0 %v271
        %v365 = vpop.f32.mrf.mxu0
        %v366 = vadd.f32 %v198, %v365
        %v367 = vpop.f32.mrf.mxu0
        %v368 = vpop.f32.mrf.mxu0
        %v369 = vadd.f32 %v198, %v368
        %v370 = vpop.f32.mrf.mxu0
        %371 = vmatprep.mubr.bf16.mxu0 0
        %372 = vmatmul.mubr.bf16.gmra.mxu0 %v274
        %v373 = vpop.f32.mrf.mxu0
        %v374 = vadd.f32 %v198, %v373
        %v375 = vpop.f32.mrf.mxu0
        %v376 = vpop.f32.mrf.mxu0
        %v377 = vadd.f32 %v198, %v376
        %v378 = vpop.f32.mrf.mxu0
        %379 = vdwg.mxu0
        %380 = vst [vmem:[%s164] sm:$0xff] %v318
        %381 = vst [vmem:[%s164 + $0x8] sm:$0xff] %v321
        %382 = vst [vmem:[%s164 + $0x10] sm:$0xff] %v326
        %383 = vst [vmem:[%s164 + $0x18] sm:$0xff] %v329
        %384 = vst [vmem:[%s164 + $0x20] sm:$0xff] %v334
        %385 = vst [vmem:[%s164 + $0x28] sm:$0xff] %v337
        %386 = vst [vmem:[%s164 + $0x30] sm:$0xff] %v342
        %387 = vst [vmem:[%s164 + $0x38] sm:$0xff] %v345
        %388 = vst [vmem:[%s164 + $0x40] sm:$0xff] %v350
        %389 = vst [vmem:[%s164 + $0x48] sm:$0xff] %v353
        %390 = vst [vmem:[%s164 + $0x50] sm:$0xff] %v358
        %391 = vst [vmem:[%s164 + $0x58] sm:$0xff] %v361
        %392 = vst [vmem:[%s164 + $0x60] sm:$0xff] %v366
        %393 = vst [vmem:[%s164 + $0x68] sm:$0xff] %v369
        %394 = vst [vmem:[%s164 + $0x70] sm:$0xff] %v374
        %395 = vst [vmem:[%s164 + $0x78] sm:$0xff] %v377
        %s396 = sand.u32 %s93, 1
        %s397 = scalar_lea.sflag [#allocation3], %s396
        %s398 = sand.u32 %s93, 1
        %s399 = smul.addr %s398, 128
        %s400 = scalar_lea.vmem [#allocation2], %s399
        // Predicated region
        $region33: #{tpu_custom_call.1} parent=31 // pred_check
          %p401 = pneg %p103
        $region34: #{tpu_custom_call.1} parent=31 // pred_check_branch
          %403 = sbr.rel (%p401) target = $region36
        $region35: #{tpu_custom_call.1} parent=31 // pred_region
          %s404 = smul.u32 16, %s17
          %s406 = ssub.s32 2048, 2048
          %407 = vsyncadd %s397, %s406
          %s408 = smul.addr %s404, 128
          %s409 = scalar_lea.hbm %s3, %s408
          %s410 = sshll.u32 %s400, 4
          %s411 = int_to_ptr.vmem [resolvable:$true] %s410
          %416 = dma.vmem_to_hbm [thread:$0]  %s411, 2048, %s409, %s397, 128, 128, 8
        $region36: #{tpu_custom_call.1} parent=31 // pred_fallthru
          _
      $region32: #{tpu_custom_call.1} parent=5 // pred_fallthru
        _
      %p417 = scmp.le.s32.totalorder 2, %s12
      // Predicated region
      $region37: #{tpu_custom_call.1} parent=5 // pred_check
        %p418 = pneg %p417
      $region38: #{tpu_custom_call.1} parent=5 // pred_check_branch
        %420 = sbr.rel (%p418) target = $region40
      $region39: #{tpu_custom_call.1} parent=5 // pred_region
        %s421 = ssub.s32 %s12, 2
        // Predicated region
        $region41: #{tpu_custom_call.1} parent=39 // pred_check
          %p422 = pneg %p109
        $region42: #{tpu_custom_call.1} parent=39 // pred_check_branch
          %424 = sbr.rel (%p422) target = $region44
        $region43: #{tpu_custom_call.1} parent=39 // pred_region
          %s425 = sand.u32 %s94, 1
          %s426 = scalar_lea.sflag [#allocation3], %s425
          %s427 = sand.u32 %s94, 1
          %s428 = smul.addr %s427, 128
          %s429 = scalar_lea.vmem [#allocation2], %s428
          %430 = dma.done %s426, 2048
        $region44: #{tpu_custom_call.1} parent=39 // pred_fallthru
          _
      $region40: #{tpu_custom_call.1} parent=5 // pred_fallthru
        _
    $region6: #{tpu_custom_call.1} parent=1 // loop_footer
      %s16 = sadd.s32 1, %s12
    $region7: #{tpu_custom_call.1} parent=1 // loop_footer_branch
      %11 = sbr.rel target = $region3
    $region8: #{tpu_custom_call.1} parent=1 // loop_exit
      _
    %431 = vsyncpa [#allocation3], 1
    %s432 = scalar_lea.sflag [#allocation3], 1
    %433 = vsyncpa %s432, 1

</llo_original>
